<compile_context>
chip_gen: v5e
topology: v5e:2x2
jax: 0.10.0
libtpu: 0.0.40
codegen_flags: <defaults>
</compile_context>

<pallas_src>
import functools

import jax
import jax.numpy as jnp
from jax.experimental import pallas as pl
from jax.experimental.pallas import tpu as pltpu


def _round_up(n: int, m: int) -> int:
    return ((n + m - 1) // m) * m


def _pad2d(a, rows, cols):
    pr, pc = rows - a.shape[0], cols - a.shape[1]
    if pr == 0 and pc == 0:
        return a
    return jnp.pad(a, ((0, pr), (0, pc)))


def _choose_tile_b(batch: int, max_tile: int) -> int:
    """Batch tile that avoids a mostly-empty last tile (16-row aligned for bf16)."""
    if batch <= max_tile:
        return max(16, _round_up(batch, 16))
    n_tiles = -(-batch // max_tile)
    return _round_up(-(-batch // n_tiles), 16)


def _vmem_limit_bytes(tile_b: int, f_p: int, h_p: int, o_p: int) -> int:
    """Scoped-VMEM budget with headroom (default is only 16/32 MiB)."""
    # Resident weights/biases (assume the pipeliner may double-buffer them).
    weights = 2 * ((f_p * h_p + h_p * h_p + h_p * o_p) * 2 + (2 * h_p + o_p) * 4)
    # Double-buffered x (f32) and out (f32) tiles.
    io = 2 * tile_b * (f_p + o_p) * 4
    # Intermediates: f32 h1/h2 plus bf16 casts of x/h1/h2.
    interm = tile_b * (2 * h_p * 4 + (f_p + 2 * h_p) * 2)
    need = weights + io + interm
    # Cap at 64 MiB so the request is valid on v7x (64 MiB/TC) as well.
    return int(min(max(2 * need, 32 * 1024 * 1024), 64 * 1024 * 1024))


def mlp_kernel(x_ref, w1_ref, b1_ref, w2_ref, b2_ref, w3_ref, b3_ref, out_ref):
    """One batch tile of the fused MLP.

    x_ref:  [TILE_B, F_p]  f32 (cast to bf16 on the VPU here)
    w*_ref: padded bf16 weights (constant index_map -> VMEM-resident)
    b*_ref: padded f32 biases
    out_ref:[TILE_B, O_p]  f32 (lane-dense; sliced back in the wrapper)
    """
    x = x_ref[...].astype(jnp.bfloat16)

    # hidden1: bf16 MXU matmul, f32 accumulate; bias + LeakyReLU(0.2) in f32.
    h1 = jnp.dot(x, w1_ref[...], preferred_element_type=jnp.float32) + b1_ref[...]
    h1 = jnp.maximum(h1, 0.2 * h1)

    # hidden2
    h2 = jnp.dot(h1.astype(jnp.bfloat16), w2_ref[...],
                 preferred_element_type=jnp.float32) + b2_ref[...]
    h2 = jnp.maximum(h2, 0.2 * h2)

    # predict
    out_ref[...] = jnp.dot(h2.astype(jnp.bfloat16), w3_ref[...],
                           preferred_element_type=jnp.float32) + b3_ref[...]


def prepare_params(params):
    """Pad every dim to a multiple of 128 and cast weights to bf16 — done ONCE,
    outside the per-call path (params are static across forwards).

    Zero padding is semantics-preserving: padded x columns hit zero weight rows,
    padded hidden columns stay exactly 0 through bias (0) and LeakyReLU(0)=0.
    """
    n_feature, size_hidden = params["w1"].shape
    n_output = params["w3"].shape[1]
    f_p = _round_up(n_feature, 128)
    h_p = _round_up(size_hidden, 128)
    o_p = _round_up(n_output, 128)
    return {
        "w1": _pad2d(params["w1"], f_p, h_p).astype(jnp.bfloat16),
        "b1": _pad2d(params["b1"], 1, h_p).astype(jnp.float32),
        "w2": _pad2d(params["w2"], h_p, h_p).astype(jnp.bfloat16),
        "b2": _pad2d(params["b2"], 1, h_p).astype(jnp.float32),
        "w3": _pad2d(params["w3"], h_p, o_p).astype(jnp.bfloat16),
        "b3": _pad2d(params["b3"], 1, o_p).astype(jnp.float32),
    }


@functools.partial(jax.jit, static_argnames=("n_output", "max_tile_b"))
def net_forward(x, pp, *, n_output: int, max_tile_b: int = 1024):
    """Pallas forward of Net.  x: [batch, n_feature] f32, pp = prepare_params(...)."""
    batch, n_feature = x.shape
    f_p, h_p = pp["w1"].shape
    o_p = pp["w3"].shape[1]
    assert f_p >= n_feature and o_p >= n_output

    tile_b = _choose_tile_b(batch, max_tile_b)
    b_p = _round_up(batch, tile_b)

    # x stays f32; pad only when needed (no-op when batch/feature already aligned).
    x_p = x if (b_p == batch and f_p == n_feature) else _pad2d(x, b_p, f_p)

    grid = (b_p // tile_b,)

    cost = pl.CostEstimate(
        flops=2 * b_p * (f_p * h_p + h_p * h_p + h_p * o_p),
        transcendentals=0,
        bytes_accessed=(x_p.size * 4
                        + (pp["w1"].size + pp["w2"].size + pp["w3"].size) * 2
                        + (pp["b1"].size + pp["b2"].size + pp["b3"].size) * 4
                        + b_p * o_p * 4),
    )

    out_padded = pl.pallas_call(
        mlp_kernel,
        out_shape=jax.ShapeDtypeStruct((b_p, o_p), jnp.float32),
        grid_spec=pltpu.PrefetchScalarGridSpec(
            num_scalar_prefetch=0,
            grid=grid,
            in_specs=[
                pl.BlockSpec((tile_b, f_p), lambda i: (i, 0)),  # x tile (moves)
                pl.BlockSpec((f_p, h_p), lambda i: (0, 0)),     # w1 (resident)
                pl.BlockSpec((1, h_p), lambda i: (0, 0)),       # b1 (resident)
                pl.BlockSpec((h_p, h_p), lambda i: (0, 0)),     # w2 (resident)
                pl.BlockSpec((1, h_p), lambda i: (0, 0)),       # b2 (resident)
                pl.BlockSpec((h_p, o_p), lambda i: (0, 0)),     # w3 (resident)
                pl.BlockSpec((1, o_p), lambda i: (0, 0)),       # b3 (resident)
            ],
            out_specs=pl.BlockSpec((tile_b, o_p), lambda i: (i, 0)),
        ),
        compiler_params=pltpu.CompilerParams(
            dimension_semantics=("parallel",),  # shard batch tiles across TCs
            vmem_limit_bytes=_vmem_limit_bytes(tile_b, f_p, h_p, o_p),
        ),
        cost_estimate=cost,
    )(x_p, pp["w1"], pp["b1"], pp["w2"], pp["b2"], pp["w3"], pp["b3"])

    return out_padded[:batch, :n_output]


def init_params(key, n_feature, size_hidden, n_output):
    """PyTorch-style init: U(-1/sqrt(fan_in), 1/sqrt(fan_in)); W stored [in, out]."""
    k1, k2, k3, k4, k5, k6 = jax.random.split(key, 6)

    def unif(k, shape, fan_in):
        bound = 1.0 / jnp.sqrt(jnp.float32(fan_in))
        return jax.random.uniform(k, shape, jnp.float32, -bound, bound)

    return {
        "w1": unif(k1, (n_feature, size_hidden), n_feature),
        "b1": unif(k2, (1, size_hidden), n_feature),
        "w2": unif(k3, (size_hidden, size_hidden), size_hidden),
        "b2": unif(k4, (1, size_hidden), size_hidden),
        "w3": unif(k5, (size_hidden, n_output), size_hidden),
        "b3": unif(k6, (1, n_output), size_hidden),
    }


def net_forward_ref(x, p, *, emulate_bf16=True):
    """Pure-JAX reference (optionally emulating the kernel's bf16 operand casts)."""
    c = (lambda a: a.astype(jnp.bfloat16).astype(jnp.float32)) if emulate_bf16 else (lambda a: a)
    h1 = c(x) @ c(p["w1"]) + p["b1"]
    h1 = jnp.where(h1 >= 0, h1, 0.2 * h1)
    h2 = c(h1) @ c(p["w2"]) + p["b2"]
    h2 = jnp.where(h2 >= 0, h2, 0.2 * h2)
    return c(h2) @ c(p["w3"]) + p["b3"]


if __name__ == "__main__":
    key = jax.random.PRNGKey(0)

    # --- Test 1: small shapes consistent with Net(n_feature, size_hidden, n_output)
    batch, n_feature, size_hidden, n_output = 8, 16, 32, 4
    kx, kp = jax.random.split(key)
    x = jax.random.normal(kx, (batch, n_feature), jnp.float32)
    params = init_params(kp, n_feature, size_hidden, n_output)
    pp = prepare_params(params)  # pad + bf16 cast done once, outside the call path

    y = jax.block_until_ready(net_forward(x, pp, n_output=n_output))
    assert y.shape == (batch, n_output)

    y_ref_bf16 = net_forward_ref(x, params, emulate_bf16=True)
    assert jnp.allclose(y, y_ref_bf16, atol=1e-4, rtol=1e-4), "mismatch vs bf16 ref"
    y_ref_f32 = net_forward_ref(x, params, emulate_bf16=False)
    assert jnp.allclose(y, y_ref_f32, atol=5e-2, rtol=5e-2), "mismatch vs f32 ref"

    # --- Test 2: ragged batch + multi-tile grid path (3 batch tiles of 208 rows)
    b2, f2, h2, o2 = 600, 40, 96, 7
    kx2, kp2 = jax.random.split(kp)
    x2 = jax.random.normal(kx2, (b2, f2), jnp.float32)
    params2 = init_params(kp2, f2, h2, o2)
    pp2 = prepare_params(params2)

    y2 = jax.block_until_ready(net_forward(x2, pp2, n_output=o2, max_tile_b=256))
    assert y2.shape == (b2, o2)
    y2_ref = net_forward_ref(x2, params2, emulate_bf16=True)
    assert jnp.allclose(y2, y2_ref, atol=1e-3, rtol=1e-3), "mismatch vs bf16 ref (tiled)"

    print("KERNEL_OK")
</pallas_src>

<mosaic_0001>
module attributes {stable_mosaic.version = 11 : i64} {
  func.func @mlp_kernel(%arg0: i32, %arg1: memref<16x128xf32, #tpu.memory_space<vmem>>, %arg2: memref<128x128xbf16, #tpu.memory_space<vmem>>, %arg3: memref<1x128xf32, #tpu.memory_space<vmem>>, %arg4: memref<128x128xbf16, #tpu.memory_space<vmem>>, %arg5: memref<1x128xf32, #tpu.memory_space<vmem>>, %arg6: memref<128x128xbf16, #tpu.memory_space<vmem>>, %arg7: memref<1x128xf32, #tpu.memory_space<vmem>>, %arg8: memref<16x128xf32, #tpu.memory_space<vmem>>) attributes {dimension_semantics = [#tpu.dimension_semantics<parallel>], iteration_bounds = array<i64: 1>, scalar_prefetch = 0 : i64, scratch_operands = 0 : i64, tpu.core_type = #tpu.core_type<tc>, window_params = [{transform_indices = @transform_0, window_bounds = array<i64: 16, 128>}, {pipeline_mode = #tpu.pipeline_mode<synchronous>, transform_indices = @transform_1, window_bounds = array<i64: 128, 128>}, {pipeline_mode = #tpu.pipeline_mode<synchronous>, transform_indices = @transform_2, window_bounds = array<i64: 1, 128>}, {pipeline_mode = #tpu.pipeline_mode<synchronous>, transform_indices = @transform_3, window_bounds = array<i64: 128, 128>}, {pipeline_mode = #tpu.pipeline_mode<synchronous>, transform_indices = @transform_4, window_bounds = array<i64: 1, 128>}, {pipeline_mode = #tpu.pipeline_mode<synchronous>, transform_indices = @transform_5, window_bounds = array<i64: 128, 128>}, {pipeline_mode = #tpu.pipeline_mode<synchronous>, transform_indices = @transform_6, window_bounds = array<i64: 1, 128>}, {transform_indices = @transform_7, window_bounds = array<i64: 16, 128>}]} {
    %c0 = arith.constant 0 : index
    %c0_0 = arith.constant 0 : index
    %0 = vector.load %arg1[%c0, %c0_0] : memref<16x128xf32, #tpu.memory_space<vmem>>, vector<16x128xf32>
    %1 = arith.truncf %0 : vector<16x128xf32> to vector<16x128xbf16>
    %c0_1 = arith.constant 0 : index
    %c0_2 = arith.constant 0 : index
    %2 = vector.load %arg2[%c0_1, %c0_2] : memref<128x128xbf16, #tpu.memory_space<vmem>>, vector<128x128xbf16>
    %cst = arith.constant dense<0.000000e+00> : vector<16x128xf32>
    %3 = tpu.matmul %1, %2, %cst {dimension_numbers = #tpu.dot_dimension_numbers<[1], [0], [0], [1], [0, 0, 1, 1], [], []>} : vector<16x128xbf16>, vector<128x128xbf16>, vector<16x128xf32> -> vector<16x128xf32>
    %c0_3 = arith.constant 0 : index
    %c0_4 = arith.constant 0 : index
    %4 = vector.load %arg3[%c0_3, %c0_4] : memref<1x128xf32, #tpu.memory_space<vmem>>, vector<1x128xf32>
    %5 = vector.broadcast %4 : vector<1x128xf32> to vector<16x128xf32>
    %6 = arith.addf %3, %5 : vector<16x128xf32>
    %cst_5 = arith.constant 2.000000e-01 : f32
    %7 = vector.broadcast %cst_5 : f32 to vector<16x128xf32>
    %8 = arith.mulf %7, %6 : vector<16x128xf32>
    %9 = arith.maximumf %6, %8 : vector<16x128xf32>
    %10 = arith.truncf %9 : vector<16x128xf32> to vector<16x128xbf16>
    %c0_6 = arith.constant 0 : index
    %c0_7 = arith.constant 0 : index
    %11 = vector.load %arg4[%c0_6, %c0_7] : memref<128x128xbf16, #tpu.memory_space<vmem>>, vector<128x128xbf16>
    %cst_8 = arith.constant dense<0.000000e+00> : vector<16x128xf32>
    %12 = tpu.matmul %10, %11, %cst_8 {dimension_numbers = #tpu.dot_dimension_numbers<[1], [0], [0], [1], [0, 0, 1, 1], [], []>} : vector<16x128xbf16>, vector<128x128xbf16>, vector<16x128xf32> -> vector<16x128xf32>
    %c0_9 = arith.constant 0 : index
    %c0_10 = arith.constant 0 : index
    %13 = vector.load %arg5[%c0_9, %c0_10] : memref<1x128xf32, #tpu.memory_space<vmem>>, vector<1x128xf32>
    %14 = vector.broadcast %13 : vector<1x128xf32> to vector<16x128xf32>
    %15 = arith.addf %12, %14 : vector<16x128xf32>
    %cst_11 = arith.constant 2.000000e-01 : f32
    %16 = vector.broadcast %cst_11 : f32 to vector<16x128xf32>
    %17 = arith.mulf %16, %15 : vector<16x128xf32>
    %18 = arith.maximumf %15, %17 : vector<16x128xf32>
    %19 = arith.truncf %18 : vector<16x128xf32> to vector<16x128xbf16>
    %c0_12 = arith.constant 0 : index
    %c0_13 = arith.constant 0 : index
    %20 = vector.load %arg6[%c0_12, %c0_13] : memref<128x128xbf16, #tpu.memory_space<vmem>>, vector<128x128xbf16>
    %cst_14 = arith.constant dense<0.000000e+00> : vector<16x128xf32>
    %21 = tpu.matmul %19, %20, %cst_14 {dimension_numbers = #tpu.dot_dimension_numbers<[1], [0], [0], [1], [0, 0, 1, 1], [], []>} : vector<16x128xbf16>, vector<128x128xbf16>, vector<16x128xf32> -> vector<16x128xf32>
    %c0_15 = arith.constant 0 : index
    %c0_16 = arith.constant 0 : index
    %22 = vector.load %arg7[%c0_15, %c0_16] : memref<1x128xf32, #tpu.memory_space<vmem>>, vector<1x128xf32>
    %23 = vector.broadcast %22 : vector<1x128xf32> to vector<16x128xf32>
    %24 = arith.addf %21, %23 : vector<16x128xf32>
    %c0_17 = arith.constant 0 : index
    %c0_18 = arith.constant 0 : index
    %25 = vector.load %arg8[%c0_17, %c0_18] : memref<16x128xf32, #tpu.memory_space<vmem>>, vector<16x128xf32>
    tpu.vector_store %arg8[%c0_17, %c0_18], %24 {strides = array<i32>} : memref<16x128xf32, #tpu.memory_space<vmem>>, vector<16x128xf32>,
    return
  }
  func.func @transform_0(%arg0: i32) -> (i32, i32) {
    %c0_i32 = arith.constant 0 : i32
    %c0_i32_0 = arith.constant 0 : i32
    return %arg0, %c0_i32 : i32, i32
  }
  func.func @transform_1(%arg0: i32) -> (i32, i32) {
    %c0_i32 = arith.constant 0 : i32
    %c0_i32_0 = arith.constant 0 : i32
    %c0_i32_1 = arith.constant 0 : i32
    return %c0_i32, %c0_i32_0 : i32, i32
  }
  func.func @transform_2(%arg0: i32) -> (i32, i32) {
    %c0_i32 = arith.constant 0 : i32
    %c0_i32_0 = arith.constant 0 : i32
    %c0_i32_1 = arith.constant 0 : i32
    return %c0_i32, %c0_i32_0 : i32, i32
  }
  func.func @transform_3(%arg0: i32) -> (i32, i32) {
    %c0_i32 = arith.constant 0 : i32
    %c0_i32_0 = arith.constant 0 : i32
    %c0_i32_1 = arith.constant 0 : i32
    return %c0_i32, %c0_i32_0 : i32, i32
  }
  func.func @transform_4(%arg0: i32) -> (i32, i32) {
    %c0_i32 = arith.constant 0 : i32
    %c0_i32_0 = arith.constant 0 : i32
    %c0_i32_1 = arith.constant 0 : i32
    return %c0_i32, %c0_i32_0 : i32, i32
  }
  func.func @transform_5(%arg0: i32) -> (i32, i32) {
    %c0_i32 = arith.constant 0 : i32
    %c0_i32_0 = arith.constant 0 : i32
    %c0_i32_1 = arith.constant 0 : i32
    return %c0_i32, %c0_i32_0 : i32, i32
  }
  func.func @transform_6(%arg0: i32) -> (i32, i32) {
    %c0_i32 = arith.constant 0 : i32
    %c0_i32_0 = arith.constant 0 : i32
    %c0_i32_1 = arith.constant 0 : i32
    return %c0_i32, %c0_i32_0 : i32, i32
  }
  func.func @transform_7(%arg0: i32) -> (i32, i32) {
    %c0_i32 = arith.constant 0 : i32
    %c0_i32_0 = arith.constant 0 : i32
    return %arg0, %c0_i32 : i32, i32
  }
}

</mosaic_0001>

<llo_original>
// kernel: net_forward.1
$region0: #{net_forward.1}
  #allocation0 [shape = 'u32[]', space=smem, size = 0x4, offset = 0x4, fixed_abs, tag = 'smem constant byte address 0x4 - core index']
  #allocation1 [shape = 'u32[72,128]{1,0:T(1,128)}', space=vmem, size = 0x9000, scoped, tag = 'internal scratch']
  %s0 = inlined_call_operand.vmem [shape: f32[16,128], index: 0, kind: input, shape index: {}]
  %s1 = inlined_call_operand.hbm [shape: bf16[128,128], index: 1, kind: input, shape index: {}]
  %s2 = inlined_call_operand.vmem [shape: f32[1,128], index: 2, kind: input, shape index: {}]
  %s3 = inlined_call_operand.hbm [shape: bf16[128,128], index: 3, kind: input, shape index: {}]
  %s4 = inlined_call_operand.vmem [shape: f32[1,128], index: 4, kind: input, shape index: {}]
  %s5 = inlined_call_operand.hbm [shape: bf16[128,128], index: 5, kind: input, shape index: {}]
  %s6 = inlined_call_operand.vmem [shape: f32[1,128], index: 6, kind: input, shape index: {}]
  %s7 = inlined_call_operand.vmem [shape: f32[16,128], index: 7, kind: output, shape index: {}]
  %s8 = sld [smem:[#allocation0]]
  $region50: #{net_forward.1} parent=0
    _
  %s10 = ssub.s32 1, %s8
  %s11 = scalar_select 0, %s10, %s8
  $region1: #{net_forward.1} parent=0
    #allocation2 [shape = 'u8[32768]{0}', space=vmem, size = 0x8000, scoped, tag = 'input window, operand 1, single buffered']
    #allocation3 [shape = 's32[1]{0}', space=sflag, size = 0x4, scoped, tag = 'scoped memory for net_forward.1']
    #allocation4 [shape = 'u8[32768]{0}', space=vmem, size = 0x8000, scoped, tag = 'input window, operand 3, single buffered']
    #allocation5 [shape = 's32[1]{0}', space=sflag, size = 0x4, scoped, tag = 'scoped memory for net_forward.1']
    #allocation6 [shape = 'u8[32768]{0}', space=vmem, size = 0x8000, scoped, tag = 'input window, operand 5, single buffered']
    %12 = vsyncpa [#allocation3], 0
    %13 = vsyncpa [#allocation5], 0
    // Predicated region
    $region2: #{net_forward.1} parent=1 // pred_check
      _
    $region3: #{net_forward.1} parent=1 // pred_check_branch
      %15 = sbr.rel (0) target = $region5
    $region4: #{net_forward.1} parent=1 // pred_region
      _
    $region5: #{net_forward.1} parent=1 // pred_fallthru
      _
    // Predicated region
    $region6: #{net_forward.1} parent=1 // pred_check
      _
    $region7: #{net_forward.1} parent=1 // pred_check_branch
      %17 = sbr.rel (0) target = $region9
    $region8: #{net_forward.1} parent=1 // pred_region
      %19 = vsyncadd [#allocation3], 0
      %s20 = sshll.u32 %s1, 4
      %s21 = int_to_ptr.hbm [resolvable:$true] %s20
      %s22 = sshll.u32 [#allocation2], 4
      %s23 = int_to_ptr.vmem [resolvable:$true] %s22
      %28 = dma.hbm_to_vmem [thread:$0]  %s21, 1024, %s23, [#allocation3], 64, 64, 4
    $region9: #{net_forward.1} parent=1 // pred_fallthru
      _
    // Predicated region
    $region10: #{net_forward.1} parent=1 // pred_check
      _
    $region11: #{net_forward.1} parent=1 // pred_check_branch
      %30 = sbr.rel (0) target = $region13
    $region12: #{net_forward.1} parent=1 // pred_region
      _
    $region13: #{net_forward.1} parent=1 // pred_fallthru
      _
    // Predicated region
    $region14: #{net_forward.1} parent=1 // pred_check
      _
    $region15: #{net_forward.1} parent=1 // pred_check_branch
      %32 = sbr.rel (0) target = $region17
    $region16: #{net_forward.1} parent=1 // pred_region
      %34 = vsyncadd [#allocation5], 0
      %s35 = sshll.u32 %s3, 4
      %s36 = int_to_ptr.hbm [resolvable:$true] %s35
      %s37 = sshll.u32 [#allocation4], 4
      %s38 = int_to_ptr.vmem [resolvable:$true] %s37
      %43 = dma.hbm_to_vmem [thread:$0]  %s36, 1024, %s38, [#allocation5], 64, 64, 4
    $region17: #{net_forward.1} parent=1 // pred_fallthru
      _
    // Predicated region
    $region18: #{net_forward.1} parent=1 // pred_check
      _
    $region19: #{net_forward.1} parent=1 // pred_check_branch
      %45 = sbr.rel (0) target = $region21
    $region20: #{net_forward.1} parent=1 // pred_region
      _
    $region21: #{net_forward.1} parent=1 // pred_fallthru
      _
    // Predicated region
    $region22: #{net_forward.1} parent=1 // pred_check
      _
    $region23: #{net_forward.1} parent=1 // pred_check_branch
      %47 = sbr.rel (0) target = $region25
    $region24: #{net_forward.1} parent=1 // pred_region
      %49 = vsyncadd [#allocation5], 0
      %s50 = sshll.u32 %s5, 4
      %s51 = int_to_ptr.hbm [resolvable:$true] %s50
      %s52 = sshll.u32 [#allocation6], 4
      %s53 = int_to_ptr.vmem [resolvable:$true] %s52
      %58 = dma.hbm_to_vmem [thread:$0]  %s51, 1024, %s53, [#allocation5], 64, 64, 4
    $region25: #{net_forward.1} parent=1 // pred_fallthru
      _
    // Predicated region
    $region26: #{net_forward.1} parent=1 // pred_check
      _
    $region27: #{net_forward.1} parent=1 // pred_check_branch
      %60 = sbr.rel (0) target = $region29
    $region28: #{net_forward.1} parent=1 // pred_region
      _
    $region29: #{net_forward.1} parent=1 // pred_fallthru
      _
    // Predicated region
    $region30: #{net_forward.1} parent=1 // pred_check
      _
    $region31: #{net_forward.1} parent=1 // pred_check_branch
      %62 = sbr.rel (0) target = $region33
    $region32: #{net_forward.1} parent=1 // pred_region
      %64 = dma.done [#allocation3], 1024
    $region33: #{net_forward.1} parent=1 // pred_fallthru
      _
    // Predicated region
    $region34: #{net_forward.1} parent=1 // pred_check
      _
    $region35: #{net_forward.1} parent=1 // pred_check_branch
      %66 = sbr.rel (0) target = $region37
    $region36: #{net_forward.1} parent=1 // pred_region
      %68 = dma.done [#allocation5], 1024
    $region37: #{net_forward.1} parent=1 // pred_fallthru
      _
    // Predicated region
    $region38: #{net_forward.1} parent=1 // pred_check
      _
    $region39: #{net_forward.1} parent=1 // pred_check_branch
      %70 = sbr.rel (0) target = $region41
    $region40: #{net_forward.1} parent=1 // pred_region
      %72 = dma.done [#allocation5], 1024
    $region41: #{net_forward.1} parent=1 // pred_fallthru
      _
    %v73 = vld [vmem:[%s0] sm:$0xff]
    %v74 = vld [vmem:[%s0 + $0x8] sm:$0xff]
    %v75 = vpack.c.bf16 %v74, %v73
    %v76 = vld [vmem:[#allocation2] sm:$0xf]
    %v77 = vld [vmem:[#allocation2 + $0x4] sm:$0xf]
    %v78 = vld [vmem:[#allocation2 + $0x8] sm:$0xf]
    %v79 = vld [vmem:[#allocation2 + $0xc] sm:$0xf]
    %v80 = vld [vmem:[#allocation2 + $0x10] sm:$0xf]
    %v81 = vld [vmem:[#allocation2 + $0x14] sm:$0xf]
    %v82 = vld [vmem:[#allocation2 + $0x18] sm:$0xf]
    %v83 = vld [vmem:[#allocation2 + $0x1c] sm:$0xf]
    %v84 = vld [vmem:[#allocation2 + $0x20] sm:$0xf]
    %v85 = vld [vmem:[#allocation2 + $0x24] sm:$0xf]
    %v86 = vld [vmem:[#allocation2 + $0x28] sm:$0xf]
    %v87 = vld [vmem:[#allocation2 + $0x2c] sm:$0xf]
    %v88 = vld [vmem:[#allocation2 + $0x30] sm:$0xf]
    %v89 = vld [vmem:[#allocation2 + $0x34] sm:$0xf]
    %v90 = vld [vmem:[#allocation2 + $0x38] sm:$0xf]
    %v91 = vld [vmem:[#allocation2 + $0x3c] sm:$0xf]
    %v92 = vld [vmem:[%s2] sm:$0x1]
    %v94 = vperm.slane %v92, 0
    %v112 = vunpack.c.l.b16 %v76
    %v113 = vunpack.c.l.b16 %v77
    %v114 = vunpack.c.l.b16 %v78
    %v115 = vunpack.c.l.b16 %v79
    %v116 = vunpack.c.l.b16 %v80
    %v117 = vunpack.c.l.b16 %v81
    %v118 = vunpack.c.l.b16 %v82
    %v119 = vunpack.c.l.b16 %v83
    %v120 = vunpack.c.l.b16 %v84
    %v121 = vunpack.c.l.b16 %v85
    %v122 = vunpack.c.l.b16 %v86
    %v123 = vunpack.c.l.b16 %v87
    %v124 = vunpack.c.l.b16 %v88
    %v125 = vunpack.c.l.b16 %v89
    %v126 = vunpack.c.l.b16 %v90
    %v127 = vunpack.c.l.b16 %v91
    %v128 = vpack.c.b16 %v113, %v112
    %v129 = vpack.c.b16 %v115, %v114
    %v130 = vpack.c.b16 %v117, %v116
    %v131 = vpack.c.b16 %v119, %v118
    %v132 = vpack.c.b16 %v121, %v120
    %v133 = vpack.c.b16 %v123, %v122
    %v134 = vpack.c.b16 %v125, %v124
    %v135 = vpack.c.b16 %v127, %v126
    %144 = vmatpush.bf16.msra.mxu0 %v135
    %145 = vmatpush.bf16.msra.mxu0 %v134
    %146 = vmatpush.bf16.msra.mxu0 %v133
    %147 = vmatpush.bf16.msra.mxu0 %v132
    %148 = vmatpush.bf16.msra.mxu0 %v131
    %149 = vmatpush.bf16.msra.mxu0 %v130
    %150 = vmatpush.bf16.msra.mxu0 %v129
    %151 = vmatpush.bf16.msra.mxu0 %v128
    %152 = vmatmul.bf16.gmra.mxu0 %v75
    %v153 = vpop.f32.mrf.mxu0
    %v154 = vadd.f32 %v94, %v153
    %v155 = vpop.f32.mrf.mxu0
    %v156 = vadd.f32 %v94, %v155
    %157 = vdwg.mxu0
    %v158 = vmul.f32 %v154, 0.2
    %v159 = vmul.f32 %v156, 0.2
    %v160 = vmax.f32 %v154, %v158
    %v161 = vmax.f32 %v156, %v159
    %v162 = vpack.c.bf16 %v161, %v160
    %v163 = vld [vmem:[#allocation4] sm:$0xf]
    %v164 = vld [vmem:[#allocation4 + $0x4] sm:$0xf]
    %v165 = vld [vmem:[#allocation4 + $0x8] sm:$0xf]
    %v166 = vld [vmem:[#allocation4 + $0xc] sm:$0xf]
    %v167 = vld [vmem:[#allocation4 + $0x10] sm:$0xf]
    %v168 = vld [vmem:[#allocation4 + $0x14] sm:$0xf]
    %v169 = vld [vmem:[#allocation4 + $0x18] sm:$0xf]
    %v170 = vld [vmem:[#allocation4 + $0x1c] sm:$0xf]
    %v171 = vld [vmem:[#allocation4 + $0x20] sm:$0xf]
    %v172 = vld [vmem:[#allocation4 + $0x24] sm:$0xf]
    %v173 = vld [vmem:[#allocation4 + $0x28] sm:$0xf]
    %v174 = vld [vmem:[#allocation4 + $0x2c] sm:$0xf]
    %v175 = vld [vmem:[#allocation4 + $0x30] sm:$0xf]
    %v176 = vld [vmem:[#allocation4 + $0x34] sm:$0xf]
    %v177 = vld [vmem:[#allocation4 + $0x38] sm:$0xf]
    %v178 = vld [vmem:[#allocation4 + $0x3c] sm:$0xf]
    %v179 = vld [vmem:[%s4] sm:$0x1]
    %v181 = vperm.slane %v179, 0
    %v199 = vunpack.c.l.b16 %v163
    %v200 = vunpack.c.l.b16 %v164
    %v201 = vunpack.c.l.b16 %v165
    %v202 = vunpack.c.l.b16 %v166
    %v203 = vunpack.c.l.b16 %v167
    %v204 = vunpack.c.l.b16 %v168
    %v205 = vunpack.c.l.b16 %v169
    %v206 = vunpack.c.l.b16 %v170
    %v207 = vunpack.c.l.b16 %v171
    %v208 = vunpack.c.l.b16 %v172
    %v209 = vunpack.c.l.b16 %v173
    %v210 = vunpack.c.l.b16 %v174
    %v211 = vunpack.c.l.b16 %v175
    %v212 = vunpack.c.l.b16 %v176
    %v213 = vunpack.c.l.b16 %v177
    %v214 = vunpack.c.l.b16 %v178
    %v215 = vpack.c.b16 %v200, %v199
    %v216 = vpack.c.b16 %v202, %v201
    %v217 = vpack.c.b16 %v204, %v203
    %v218 = vpack.c.b16 %v206, %v205
    %v219 = vpack.c.b16 %v208, %v207
    %v220 = vpack.c.b16 %v210, %v209
    %v221 = vpack.c.b16 %v212, %v211
    %v222 = vpack.c.b16 %v214, %v213
    %231 = vmatpush.bf16.msra.mxu0 %v222
    %232 = vmatpush.bf16.msra.mxu0 %v221
    %233 = vmatpush.bf16.msra.mxu0 %v220
    %234 = vmatpush.bf16.msra.mxu0 %v219
    %235 = vmatpush.bf16.msra.mxu0 %v218
    %236 = vmatpush.bf16.msra.mxu0 %v217
    %237 = vmatpush.bf16.msra.mxu0 %v216
    %238 = vmatpush.bf16.msra.mxu0 %v215
    %239 = vmatmul.bf16.gmra.mxu0 %v162
    %v240 = vpop.f32.mrf.mxu0
    %v241 = vadd.f32 %v181, %v240
    %v242 = vpop.f32.mrf.mxu0
    %v243 = vadd.f32 %v181, %v242
    %244 = vdwg.mxu0
    %v245 = vmul.f32 %v241, 0.2
    %v246 = vmul.f32 %v243, 0.2
    %v247 = vmax.f32 %v241, %v245
    %v248 = vmax.f32 %v243, %v246
    %v249 = vpack.c.bf16 %v248, %v247
    %v250 = vld [vmem:[#allocation6] sm:$0xf]
    %v251 = vld [vmem:[#allocation6 + $0x4] sm:$0xf]
    %v252 = vld [vmem:[#allocation6 + $0x8] sm:$0xf]
    %v253 = vld [vmem:[#allocation6 + $0xc] sm:$0xf]
    %v254 = vld [vmem:[#allocation6 + $0x10] sm:$0xf]
    %v255 = vld [vmem:[#allocation6 + $0x14] sm:$0xf]
    %v256 = vld [vmem:[#allocation6 + $0x18] sm:$0xf]
    %v257 = vld [vmem:[#allocation6 + $0x1c] sm:$0xf]
    %v258 = vld [vmem:[#allocation6 + $0x20] sm:$0xf]
    %v259 = vld [vmem:[#allocation6 + $0x24] sm:$0xf]
    %v260 = vld [vmem:[#allocation6 + $0x28] sm:$0xf]
    %v261 = vld [vmem:[#allocation6 + $0x2c] sm:$0xf]
    %v262 = vld [vmem:[#allocation6 + $0x30] sm:$0xf]
    %v263 = vld [vmem:[#allocation6 + $0x34] sm:$0xf]
    %v264 = vld [vmem:[#allocation6 + $0x38] sm:$0xf]
    %v265 = vld [vmem:[#allocation6 + $0x3c] sm:$0xf]
    %v266 = vld [vmem:[%s6] sm:$0x1]
    %v268 = vperm.slane %v266, 0
    %v286 = vunpack.c.l.b16 %v250
    %v287 = vunpack.c.l.b16 %v251
    %v288 = vunpack.c.l.b16 %v252
    %v289 = vunpack.c.l.b16 %v253
    %v290 = vunpack.c.l.b16 %v254
    %v291 = vunpack.c.l.b16 %v255
    %v292 = vunpack.c.l.b16 %v256
    %v293 = vunpack.c.l.b16 %v257
    %v294 = vunpack.c.l.b16 %v258
    %v295 = vunpack.c.l.b16 %v259
    %v296 = vunpack.c.l.b16 %v260
    %v297 = vunpack.c.l.b16 %v261
    %v298 = vunpack.c.l.b16 %v262
    %v299 = vunpack.c.l.b16 %v263
    %v300 = vunpack.c.l.b16 %v264
    %v301 = vunpack.c.l.b16 %v265
    %v302 = vpack.c.b16 %v287, %v286
    %v303 = vpack.c.b16 %v289, %v288
    %v304 = vpack.c.b16 %v291, %v290
    %v305 = vpack.c.b16 %v293, %v292
    %v306 = vpack.c.b16 %v295, %v294
    %v307 = vpack.c.b16 %v297, %v296
    %v308 = vpack.c.b16 %v299, %v298
    %v309 = vpack.c.b16 %v301, %v300
    %318 = vmatpush.bf16.msra.mxu0 %v309
    %319 = vmatpush.bf16.msra.mxu0 %v308
    %320 = vmatpush.bf16.msra.mxu0 %v307
    %321 = vmatpush.bf16.msra.mxu0 %v306
    %322 = vmatpush.bf16.msra.mxu0 %v305
    %323 = vmatpush.bf16.msra.mxu0 %v304
    %324 = vmatpush.bf16.msra.mxu0 %v303
    %325 = vmatpush.bf16.msra.mxu0 %v302
    %326 = vmatmul.bf16.gmra.mxu0 %v249
    %v327 = vpop.f32.mrf.mxu0
    %v328 = vadd.f32 %v268, %v327
    %v329 = vpop.f32.mrf.mxu0
    %v330 = vadd.f32 %v268, %v329
    %331 = vdwg.mxu0
    %332 = vst [vmem:[%s7] sm:$0xff] %v328
    %333 = vst [vmem:[%s7 + $0x8] sm:$0xff] %v330
    // Predicated region
    $region42: #{net_forward.1} parent=1 // pred_check
      _
    $region43: #{net_forward.1} parent=1 // pred_check_branch
      %335 = sbr.rel (0) target = $region45
    $region44: #{net_forward.1} parent=1 // pred_region
      _
    $region45: #{net_forward.1} parent=1 // pred_fallthru
      _
    // Predicated region
    $region46: #{net_forward.1} parent=1 // pred_check
      _
    $region47: #{net_forward.1} parent=1 // pred_check_branch
      %337 = sbr.rel (0) target = $region49
    $region48: #{net_forward.1} parent=1 // pred_region
      _
    $region49: #{net_forward.1} parent=1 // pred_fallthru
      _
    %338 = vsyncpa [#allocation3], 1
    %339 = vsyncpa [#allocation5], 1

</llo_original>
